<compile_context>
chip_gen: v5e
topology: v5e:2x2
jax: 0.10.0
libtpu: 0.0.40
codegen_flags: <defaults>
</compile_context>

<pallas_src>
import functools

import jax
import jax.numpy as jnp
from jax.experimental import pallas as pl
from jax.experimental.pallas import tpu as pltpu


# ----------------------------------------------------------------------------
# helpers
# ----------------------------------------------------------------------------
def _row_tile(total, width, max_pixels):
    """Largest divisor d of `total` with d*width <= max_pixels and (d*width)%8==0."""
    cap = max(1, max_pixels // max(width, 1))
    for d in range(min(total, cap), 0, -1):
        if total % d == 0 and (d * width) % 8 == 0:
            return d
    return total                      # full extent is always a legal block


def _divisor_leq(total, cap):
    for d in range(min(total, cap), 0, -1):
        if total % d == 0:
            return d
    return 1


# ----------------------------------------------------------------------------
# Stage 1: ConvTranspose2d(k=s, stride=s, p=0) + bias + ReLU + BN1-shift
#          (ConvT with k==s is a per-pixel GEMM followed by a pixel shuffle)
# ----------------------------------------------------------------------------
def _convt_relu_bn_kernel(x_ref, w_ref, b_ref, c_ref, o_ref, *, s, cout):
    """One (batch, row-tile) grid step.

    x_ref : (1, TH*W, Cin)         bf16  flattened NHWC pixels of cat([x, skip])
    w_ref : (Cin, s*s*Cout)        bf16  ConvT weight, columns in (sh, sw, c) order
    b_ref : (1, s*s*Cout)          f32   ConvT bias, tiled per (sh, sw) tap
    c_ref : (1, s*s*Cout)          f32   BN1 shift / BN1 scale (scale folded into conv2)
    o_ref : (1, TH, s, W, s*Cout)  bf16  == NHWC (TH*s, W*s, Cout) after a free reshape
    """
    z = jnp.dot(x_ref[0], w_ref[...], preferred_element_type=jnp.float32)
    z = jnp.maximum(z + b_ref[...], 0.0) + c_ref[...]       # bias + ReLU + shift (f32)
    th, w = o_ref.shape[1], o_ref.shape[3]
    sc = s * cout
    # Pixel shuffle happens *here*: upsample sub-row `sh` is a contiguous lane
    # slice of z and lands in the o_ref[:, :, sh] plane, so the wrapper reshape
    # to NHWC is a pure bitcast (no extra HBM pass for the shuffle).
    for sh in range(s):
        blk = z[:, sh * sc:(sh + 1) * sc].reshape(th, w, sc)
        o_ref[0, :, sh, :, :] = blk.astype(o_ref.dtype)


# ----------------------------------------------------------------------------
# Stage 2: Conv2d(3x3, pad=1) + bias + ReLU + BN2 (eval)   [row-tiled with halo]
# ----------------------------------------------------------------------------
def _conv3x3_relu_bn_kernel(y_hbm, w_ref, b_ref, a_ref, c_ref, o_ref,
                            slab, sem, *, th, wo, c, use_im2col):
    """One (batch, row-tile) grid step.

    y_hbm : (N, Ho, Wo, C) bf16 ref left in HBM (pl.ANY); halo gathered by DMA
    w_ref : (9*C, C)       bf16 tap-major conv weight with BN1 scale pre-folded
    b/a/c : (1, C)         f32  conv bias, BN2 scale, BN2 shift
    o_ref : (1, th, Wo, C) f32
    slab  : (th+2, Wo+2, C) bf16 VMEM scratch = zero-padded halo window
    """
    b = pl.program_id(0)
    r = pl.program_id(1)
    nrows = pl.num_programs(1)
    r0 = r * th

    # Centre rows [r0, r0+th): start the big copy first, wait right before use.
    centre = pltpu.make_async_copy(
        y_hbm.at[b, pl.ds(r0, th)],
        slab.at[pl.ds(1, th), pl.ds(1, wo)],
        sem.at[2])
    centre.start()

    # conv padding=1: the two W-halo columns are always zero.
    zcol = jnp.zeros((th + 2, 1, c), slab.dtype)
    slab[:, 0:1, :] = zcol
    slab[:, wo + 1:wo + 2, :] = zcol

    # Top halo row: previous image row, or zeros at the top border.
    @pl.when(r == 0)
    def _():
        slab[0:1, 1:wo + 1, :] = jnp.zeros((1, wo, c), slab.dtype)

    @pl.when(r > 0)
    def _():
        cp = pltpu.make_async_copy(y_hbm.at[b, pl.ds(r0 - 1, 1)],
                                   slab.at[pl.ds(0, 1), pl.ds(1, wo)],
                                   sem.at[0])
        cp.start()
        cp.wait()

    # Bottom halo row.
    @pl.when(r == nrows - 1)
    def _():
        slab[th + 1:th + 2, 1:wo + 1, :] = jnp.zeros((1, wo, c), slab.dtype)

    @pl.when(r < nrows - 1)
    def _():
        cp = pltpu.make_async_copy(y_hbm.at[b, pl.ds(r0 + th, 1)],
                                   slab.at[pl.ds(th + 1, 1), pl.ds(1, wo)],
                                   sem.at[1])
        cp.start()
        cp.wait()

    centre.wait()

    # im2col: nine shifted views of the haloed window.  Layout shuffling is
    # done in f32 (robust), only the MXU operands are bf16.
    u = slab[...].astype(jnp.float32)                       # (th+2, wo+2, c)
    taps = []
    for kh in range(3):
        rows = u[kh:kh + th]                                # (th, wo+2, c)
        for kw in range(3):
            taps.append(rows[:, kw:kw + wo, :].reshape(th * wo, c))

    if use_im2col:
        # Single MXU matmul with contraction K = 9*C.
        patch = jnp.concatenate(taps, axis=1).astype(jnp.bfloat16)   # (th*wo, 9c)
        acc = jnp.dot(patch, w_ref[...], preferred_element_type=jnp.float32)
    else:
        # Fallback: 9 accumulated tap matmuls (same math, more MXU pushes).
        wfull = w_ref[...]
        acc = jnp.zeros((th * wo, c), jnp.float32)
        for i, tap in enumerate(taps):
            acc = acc + jnp.dot(tap.astype(jnp.bfloat16),
                                wfull[i * c:(i + 1) * c, :],
                                preferred_element_type=jnp.float32)

    out = jnp.maximum(acc + b_ref[...], 0.0)                # conv bias + ReLU
    out = out * a_ref[...] + c_ref[...]                     # BN2 (eval) affine
    o_ref[0] = out.reshape(th, wo, c).astype(o_ref.dtype)


# ----------------------------------------------------------------------------
# wrapper
# ----------------------------------------------------------------------------
def decoding_block_skip(params, x_nchw, concat_nchw):
    """Forward pass of DecodingBlockSkip (eval mode). NCHW float32 in / out."""
    eps = 1e-5
    s = int(params["stride"])
    cout = int(params["bt"].shape[0])

    # ---- XLA glue on the input side (channel concat + NCHW->NHWC + bf16) ----
    xc = jnp.concatenate([x_nchw, concat_nchw], axis=1)          # (N, Cin, H, W)
    n, cin, h, w = xc.shape
    x_nhwc = jnp.transpose(xc, (0, 2, 3, 1)).astype(jnp.bfloat16)
    x_flat = x_nhwc.reshape(n, h * w, cin)                       # free reshape

    ho, wo = h * s, w * s
    k = cout * s * s

    # ---- fold BatchNorm1 (eval) ----------------------------------------------
    a1 = params["g1"] * jax.lax.rsqrt(params["rv1"] + eps)
    c1 = params["be1"] - params["rm1"] * a1
    # BN1 scale a1 is folded into the 3x3 conv weight below (exact as long as
    # gamma1 != 0, which holds for any real BatchNorm); stage 1 therefore only
    # adds the rescaled shift c1/a1 after the ReLU (one VPU multiply removed).
    shift1 = c1 / a1

    # ConvTranspose2d weight (Cin, Cout, s, s) -> (Cin, s*s*Cout), (sh, sw, c)
    # column order so the 5-D kernel output reshapes to NHWC for free.
    wt = jnp.transpose(params["wt"], (0, 2, 3, 1)).reshape(cin, k).astype(jnp.bfloat16)
    b_rep = jnp.tile(params["bt"], s * s).reshape(1, k).astype(jnp.float32)
    c_rep = jnp.tile(shift1, s * s).reshape(1, k).astype(jnp.float32)

    th1 = _row_tile(h, w, max_pixels=2048)                       # rows per grid step
    y5 = pl.pallas_call(
        functools.partial(_convt_relu_bn_kernel, s=s, cout=cout),
        out_shape=jax.ShapeDtypeStruct((n, h, s, w, s * cout), jnp.bfloat16),
        grid_spec=pltpu.PrefetchScalarGridSpec(
            num_scalar_prefetch=0,
            grid=(n, h // th1),
            in_specs=[
                pl.BlockSpec((1, th1 * w, cin), lambda b, r: (b, r, 0)),
                pl.BlockSpec((cin, k), lambda b, r: (0, 0)),
                pl.BlockSpec((1, k), lambda b, r: (0, 0)),
                pl.BlockSpec((1, k), lambda b, r: (0, 0)),
            ],
            out_specs=pl.BlockSpec((1, th1, s, w, s * cout),
                                   lambda b, r: (b, r, 0, 0, 0)),
        ),
        compiler_params=pltpu.CompilerParams(
            dimension_semantics=("parallel", "parallel"),
            vmem_limit_bytes=32 * 1024 * 1024),
    )(x_flat, wt, b_rep, c_rep)

    # Contiguous (free) reshape: (N, H, s, W, s*Cout) -> NHWC (N, Ho, Wo, Cout).
    ybuf = y5.reshape(n, ho, wo, cout)

    # ---- stage 2: 3x3 conv + ReLU + BN2 (dropout = identity in eval) ---------
    a2 = params["g2"] * jax.lax.rsqrt(params["rv2"] + eps)
    c2 = params["be2"] - params["rm2"] * a2
    wc = params["wc"] * a1[None, :, None, None]                  # fold BN1 scale
    w2 = jnp.transpose(wc, (2, 3, 1, 0)).reshape(9 * cout, cout).astype(jnp.bfloat16)
    b2 = params["bc"].reshape(1, cout).astype(jnp.float32)
    a2r = a2.reshape(1, cout).astype(jnp.float32)
    c2r = c2.reshape(1, cout).astype(jnp.float32)

    th2 = _divisor_leq(ho, 8)          # row tile; 1-row halo handled in-kernel

    def run_stage2(use_im2col):
        return pl.pallas_call(
            functools.partial(_conv3x3_relu_bn_kernel,
                              th=th2, wo=wo, c=cout, use_im2col=use_im2col),
            out_shape=jax.ShapeDtypeStruct((n, ho, wo, cout), jnp.float32),
            grid_spec=pltpu.PrefetchScalarGridSpec(
                num_scalar_prefetch=0,
                grid=(n, ho // th2),
                in_specs=[
                    pl.BlockSpec(memory_space=pl.ANY),           # y stays in HBM
                    pl.BlockSpec((9 * cout, cout), lambda b, r: (0, 0)),
                    pl.BlockSpec((1, cout), lambda b, r: (0, 0)),
                    pl.BlockSpec((1, cout), lambda b, r: (0, 0)),
                    pl.BlockSpec((1, cout), lambda b, r: (0, 0)),
                ],
                out_specs=pl.BlockSpec((1, th2, wo, cout),
                                       lambda b, r: (b, r, 0, 0)),
                scratch_shapes=[
                    pltpu.VMEM((th2 + 2, wo + 2, cout), jnp.bfloat16),
                    pltpu.SemaphoreType.DMA((3,)),
                ]),
            compiler_params=pltpu.CompilerParams(
                dimension_semantics=("parallel", "parallel"),
                vmem_limit_bytes=32 * 1024 * 1024),
        )(ybuf, w2, b2, a2r, c2r)

    try:
        out_nhwc = run_stage2(True)    # preferred: single im2col MXU matmul
    except Exception:                  # pragma: no cover
        # Mosaic versions without unaligned lane-dim concatenate: same math,
        # nine accumulated tap matmuls instead.
        out_nhwc = run_stage2(False)

    # TODO(synk): nn.Dropout(0.1) is identity in eval mode; training-mode
    # Bernoulli masking (pltpu.prng_seed / prng_random_bits) is not implemented.
    return jnp.transpose(out_nhwc, (0, 3, 1, 2))                 # back to NCHW


# ----------------------------------------------------------------------------
# pure-JAX reference (PyTorch eval-mode semantics) for a sanity check
# ----------------------------------------------------------------------------
def _reference(params, x_nchw, concat_nchw):
    eps = 1e-5
    s = int(params["stride"])
    hi = jax.lax.Precision.HIGHEST
    xc = jnp.concatenate([x_nchw, concat_nchw], axis=1).astype(jnp.float32)
    n, cin, h, w = xc.shape
    cout = params["bt"].shape[0]
    # ConvTranspose2d with kernel_size == stride, padding 0.
    yt = jnp.einsum("nihw,icab->nchawb", xc, params["wt"], precision=hi)
    yt = yt.reshape(n, cout, h * s, w * s) + params["bt"][None, :, None, None]
    yt = jnp.maximum(yt, 0.0)
    a1 = params["g1"] / jnp.sqrt(params["rv1"] + eps)
    c1 = params["be1"] - params["rm1"] * a1
    yt = yt * a1[None, :, None, None] + c1[None, :, None, None]
    yc = jax.lax.conv_general_dilated(
        yt, params["wc"], window_strides=(1, 1), padding=((1, 1), (1, 1)),
        dimension_numbers=("NCHW", "OIHW", "NCHW"), precision=hi)
    yc = jnp.maximum(yc + params["bc"][None, :, None, None], 0.0)
    a2 = params["g2"] / jnp.sqrt(params["rv2"] + eps)
    c2 = params["be2"] - params["rm2"] * a2
    return yc * a2[None, :, None, None] + c2[None, :, None, None]


if __name__ == "__main__":
    key = jax.random.PRNGKey(0)
    kk = jax.random.split(key, 10)

    filters_input, filters, stride = 4, 8, 2
    n, h, w = 2, 8, 8
    cin_total = filters_input + filters

    # Deterministic synthetic parameters (PyTorch parameter shapes).
    params = {
        "stride": stride,
        # ConvTranspose2d weight: (in_channels, out_channels, kH, kW)
        "wt": 0.1 * jax.random.normal(kk[0], (cin_total, filters, stride, stride), jnp.float32),
        "bt": 0.1 * jax.random.normal(kk[1], (filters,), jnp.float32),
        # BatchNorm1 (eval): gamma, beta, running_mean, running_var
        "g1": 1.0 + 0.1 * jax.random.normal(kk[2], (filters,), jnp.float32),
        "be1": 0.1 * jax.random.normal(kk[3], (filters,), jnp.float32),
        "rm1": jnp.zeros((filters,), jnp.float32),
        "rv1": jnp.ones((filters,), jnp.float32),
        # Conv2d weight: (out_channels, in_channels, 3, 3)
        "wc": 0.1 * jax.random.normal(kk[4], (filters, filters, 3, 3), jnp.float32),
        "bc": 0.1 * jax.random.normal(kk[5], (filters,), jnp.float32),
        # BatchNorm2 (eval)
        "g2": 1.0 + 0.1 * jax.random.normal(kk[6], (filters,), jnp.float32),
        "be2": 0.1 * jax.random.normal(kk[7], (filters,), jnp.float32),
        "rm2": jnp.zeros((filters,), jnp.float32),
        "rv2": jnp.ones((filters,), jnp.float32),
    }

    x = jax.random.normal(kk[8], (n, filters_input, h, w), jnp.float32)
    concat_layer = jax.random.normal(kk[9], (n, filters, h, w), jnp.float32)

    out = decoding_block_skip(params, x, concat_layer)
    out = jax.block_until_ready(out)
    assert out.shape == (n, filters, h * stride, w * stride), out.shape

    ref = _reference(params, x, concat_layer)
    err = float(jnp.max(jnp.abs(out - ref)))
    # bf16 MXU operands + bf16 inter-stage activations bound the error far
    # below this; structural / indexing bugs would show up as O(1) differences.
    assert err < 8e-2, f"max |kernel - reference| = {err}"
    print("KERNEL_OK")
</pallas_src>

<mosaic_0001>
module attributes {stable_mosaic.version = 11 : i64} {
  func.func @_convt_relu_bn_kernel(%arg0: i32, %arg1: i32, %arg2: memref<1x64x12xbf16, #tpu.memory_space<vmem>>, %arg3: memref<12x32xbf16, #tpu.memory_space<vmem>>, %arg4: memref<1x32xf32, #tpu.memory_space<vmem>>, %arg5: memref<1x32xf32, #tpu.memory_space<vmem>>, %arg6: memref<1x8x2x8x16xbf16, #tpu.memory_space<vmem>>) attributes {dimension_semantics = [#tpu.dimension_semantics<parallel>, #tpu.dimension_semantics<parallel>], iteration_bounds = array<i64: 2, 1>, scalar_prefetch = 0 : i64, scratch_operands = 0 : i64, tpu.core_type = #tpu.core_type<tc>, window_params = [{transform_indices = @transform_0, window_bounds = array<i64: 1, 64, 12>}, {pipeline_mode = #tpu.pipeline_mode<synchronous>, transform_indices = @transform_1, window_bounds = array<i64: 12, 32>}, {pipeline_mode = #tpu.pipeline_mode<synchronous>, transform_indices = @transform_2, window_bounds = array<i64: 1, 32>}, {pipeline_mode = #tpu.pipeline_mode<synchronous>, transform_indices = @transform_3, window_bounds = array<i64: 1, 32>}, {transform_indices = @transform_4, window_bounds = array<i64: 1, 8, 2, 8, 16>}]} {
    %c0 = arith.constant 0 : index
    %c0_0 = arith.constant 0 : index
    %c0_1 = arith.constant 0 : index
    %0 = vector.load %arg2[%c0, %c0_0, %c0_1] : memref<1x64x12xbf16, #tpu.memory_space<vmem>>, vector<1x64x12xbf16>
    %1 = vector.shape_cast %0 : vector<1x64x12xbf16> to vector<64x12xbf16>
    %c0_2 = arith.constant 0 : index
    %c0_3 = arith.constant 0 : index
    %2 = vector.load %arg3[%c0_2, %c0_3] : memref<12x32xbf16, #tpu.memory_space<vmem>>, vector<12x32xbf16>
    %cst = arith.constant dense<0.000000e+00> : vector<64x32xf32>
    %3 = tpu.matmul %1, %2, %cst {dimension_numbers = #tpu.dot_dimension_numbers<[1], [0], [0], [1], [0, 0, 1, 1], [], []>} : vector<64x12xbf16>, vector<12x32xbf16>, vector<64x32xf32> -> vector<64x32xf32>
    %c0_4 = arith.constant 0 : index
    %c0_5 = arith.constant 0 : index
    %4 = vector.load %arg4[%c0_4, %c0_5] : memref<1x32xf32, #tpu.memory_space<vmem>>, vector<1x32xf32>
    %5 = vector.broadcast %4 : vector<1x32xf32> to vector<64x32xf32>
    %6 = arith.addf %3, %5 : vector<64x32xf32>
    %cst_6 = arith.constant 0.000000e+00 : f32
    %7 = vector.broadcast %cst_6 : f32 to vector<64x32xf32>
    %8 = arith.maximumf %6, %7 : vector<64x32xf32>
    %c0_7 = arith.constant 0 : index
    %c0_8 = arith.constant 0 : index
    %9 = vector.load %arg5[%c0_7, %c0_8] : memref<1x32xf32, #tpu.memory_space<vmem>>, vector<1x32xf32>
    %10 = vector.broadcast %9 : vector<1x32xf32> to vector<64x32xf32>
    %11 = arith.addf %8, %10 : vector<64x32xf32>
    %12 = vector.extract_strided_slice %11 {offsets = [0, 0], sizes = [64, 16], strides = [1, 1]} : vector<64x32xf32> to vector<64x16xf32>
    %13 = vector.shape_cast %12 : vector<64x16xf32> to vector<8x8x16xf32>
    %14 = arith.truncf %13 : vector<8x8x16xf32> to vector<8x8x16xbf16>
    %c0_9 = arith.constant 0 : index
    %c0_10 = arith.constant 0 : index
    %c0_11 = arith.constant 0 : index
    %c0_12 = arith.constant 0 : index
    %c0_13 = arith.constant 0 : index
    %15 = vector.load %arg6[%c0_9, %c0_10, %c0_11, %c0_12, %c0_13] : memref<1x8x2x8x16xbf16, #tpu.memory_space<vmem>>, vector<1x8x1x8x16xbf16>
    %16 = vector.shape_cast %15 : vector<1x8x1x8x16xbf16> to vector<8x8x16xbf16>
    %17 = vector.shape_cast %14 : vector<8x8x16xbf16> to vector<1x8x1x8x16xbf16>
    tpu.vector_store %arg6[%c0_9, %c0_10, %c0_11, %c0_12, %c0_13], %17 {strides = array<i32>} : memref<1x8x2x8x16xbf16, #tpu.memory_space<vmem>>, vector<1x8x1x8x16xbf16>,
    %18 = vector.extract_strided_slice %11 {offsets = [0, 16], sizes = [64, 16], strides = [1, 1]} : vector<64x32xf32> to vector<64x16xf32>
    %19 = vector.shape_cast %18 : vector<64x16xf32> to vector<8x8x16xf32>
    %20 = arith.truncf %19 : vector<8x8x16xf32> to vector<8x8x16xbf16>
    %c0_14 = arith.constant 0 : index
    %c0_15 = arith.constant 0 : index
    %c1 = arith.constant 1 : index
    %c0_16 = arith.constant 0 : index
    %c0_17 = arith.constant 0 : index
    %21 = vector.load %arg6[%c0_14, %c0_15, %c1, %c0_16, %c0_17] : memref<1x8x2x8x16xbf16, #tpu.memory_space<vmem>>, vector<1x8x1x8x16xbf16>
    %22 = vector.shape_cast %21 : vector<1x8x1x8x16xbf16> to vector<8x8x16xbf16>
    %23 = vector.shape_cast %20 : vector<8x8x16xbf16> to vector<1x8x1x8x16xbf16>
    tpu.vector_store %arg6[%c0_14, %c0_15, %c1, %c0_16, %c0_17], %23 {strides = array<i32>} : memref<1x8x2x8x16xbf16, #tpu.memory_space<vmem>>, vector<1x8x1x8x16xbf16>,
    return
  }
  func.func @transform_0(%arg0: i32, %arg1: i32) -> (i32, i32, i32) {
    %c0_i32 = arith.constant 0 : i32
    %c0_i32_0 = arith.constant 0 : i32
    return %arg0, %arg1, %c0_i32 : i32, i32, i32
  }
  func.func @transform_1(%arg0: i32, %arg1: i32) -> (i32, i32) {
    %c0_i32 = arith.constant 0 : i32
    %c0_i32_0 = arith.constant 0 : i32
    %c0_i32_1 = arith.constant 0 : i32
    return %c0_i32, %c0_i32_0 : i32, i32
  }
  func.func @transform_2(%arg0: i32, %arg1: i32) -> (i32, i32) {
    %c0_i32 = arith.constant 0 : i32
    %c0_i32_0 = arith.constant 0 : i32
    %c0_i32_1 = arith.constant 0 : i32
    return %c0_i32, %c0_i32_0 : i32, i32
  }
  func.func @transform_3(%arg0: i32, %arg1: i32) -> (i32, i32) {
    %c0_i32 = arith.constant 0 : i32
    %c0_i32_0 = arith.constant 0 : i32
    %c0_i32_1 = arith.constant 0 : i32
    return %c0_i32, %c0_i32_0 : i32, i32
  }
  func.func @transform_4(%arg0: i32, %arg1: i32) -> (i32, i32, i32, i32, i32) {
    %c0_i32 = arith.constant 0 : i32
    %c0_i32_0 = arith.constant 0 : i32
    %c0_i32_1 = arith.constant 0 : i32
    %c0_i32_2 = arith.constant 0 : i32
    return %arg0, %arg1, %c0_i32, %c0_i32_0, %c0_i32_1 : i32, i32, i32, i32, i32
  }
}

</mosaic_0001>

<llo_original>
// kernel: tpu_custom_call.1
$region0: #{tpu_custom_call.1}
  #allocation0 [shape = 'u32[]', space=smem, size = 0x4, offset = 0x4, fixed_abs, tag = 'smem constant byte address 0x4 - core index']
  #allocation1 [shape = 'u32[72,128]{1,0:T(1,128)}', space=vmem, size = 0x9000, scoped, tag = 'internal scratch']
  %s0 = inlined_call_operand.vmem [shape: bf16[2,64,12], index: 0, kind: input, shape index: {}]
  %s1 = inlined_call_operand.vmem [shape: bf16[12,32], index: 1, kind: input, shape index: {}]
  %s2 = inlined_call_operand.vmem [shape: f32[1,32], index: 2, kind: input, shape index: {}]
  %s3 = inlined_call_operand.vmem [shape: f32[1,32], index: 3, kind: input, shape index: {}]
  %s4 = inlined_call_operand.hbm [shape: bf16[2,8,2,8,16], index: 4, kind: output, shape index: {}]
  %s5 = sld [smem:[#allocation0]]
  $region49: #{tpu_custom_call.1} parent=0
    _
  %s7 = ssub.s32 1, %s5
  %s8 = scalar_select 0, %s7, %s5
  $region1: #{tpu_custom_call.1} parent=0
    #allocation2 [shape = 'u8[65536]{0}', space=vmem, size = 0x10000, scoped, tag = 'output window, operand 0']
    #allocation3 [shape = 's32[2]{0}', space=sflag, size = 0x8, scoped, tag = 'scoped memory for tpu_custom_call.1']
    %9 = vsyncpa [#allocation3], 0
    %s10 = scalar_lea.sflag [#allocation3], 1
    %11 = vsyncpa %s10, 0
    loop: start=0, step=1, limit=4
    $region2: #{tpu_custom_call.1} parent=1 // loop_pre_header
      _
    $region3: #{tpu_custom_call.1} parent=1 // loop_header
      %s13 = sphi 0, %s17
      %p14 = scmp.ge.s32.totalorder %s13, 4
      %s20 = sphi 0, %s32
      %s21 = sphi 0, %s28
      %s22 = sphi 0, %s20
      %s23 = sphi 0, %s21
      %s24 = sphi 0, %s22
      %s25 = sphi 0, %s23
      %s37 = sphi 0, %s39
      %s40 = sphi 0, %s37
      %s41 = sphi 0, %s40
      %s57 = sphi 0, %s41
      %s61 = sphi 0, %s61
      %s63 = sphi 0, %s61
      %s64 = sphi 0, %s63
      %s78 = sphi 0, %s64
      %s82 = sphi 0, %s82
      %s84 = sphi 0, %s82
      %s85 = sphi 0, %s84
      %s99 = sphi 0, %s85
      %s103 = sphi 0, %s103
      %s105 = sphi 0, %s103
      %s106 = sphi 0, %s105
      %s120 = sphi 0, %s106
      %s128 = sphi 0, %s130
      %s131 = sphi 0, %s128
      %s132 = sphi 0, %s131
      %s148 = sphi 0, %s132
    $region4: #{tpu_custom_call.1} parent=1 // loop_header_branch
      %16 = sbr.rel (%p14) target = $region8
    $region5: #{tpu_custom_call.1} parent=1 // loop_body
      %s18 = ssub.s32 %s13, 1
      %s19 = ssub.s32 %s13, 2
      %s26 = sadd.s32 1, %s21
      %p27 = scmp.ge.s32.totalorder %s26, 1
      %s28 = scalar_select %p27, 0, %s26
      %s29 = sadd.s32 1, %s20
      %s30 = scalar_select %p27, %s29, %s20
      %p31 = scmp.ge.s32.totalorder %s30, 2
      %s32 = scalar_select %p31, 0, %s30
      %s33 = ssub.s32 %s20, %s32
      %s34 = ssub.s32 %s21, %s28
      %s35 = sor.u32 %s33, %s34
      %p36 = scmp.eq.s32.totalorder %s35, 0
      %s38 = sadd.s32 %s37, 1
      %s39 = scalar_select %p36, %s37, %s38
      %p42 = pneg %p36
      %p43 = scmp.eq.s32.totalorder %s13, 1
      %p44 = por %p42, %p43
      %p45 = scmp.ne.s32.totalorder %s37, %s40
      %p46 = scmp.eq.s32.totalorder %s13, 0
      %p47 = por %p45, %p46
      %p48 = scmp.ne.s32.totalorder %s37, %s40
      %p49 = scmp.eq.s32.totalorder %s18, 1
      %p50 = por %p48, %p49
      %p51 = scmp.ne.s32.totalorder %s40, %s41
      %p52 = scmp.eq.s32.totalorder %s18, 0
      %p53 = por %p51, %p52
      %p54 = scmp.ne.s32.totalorder %s40, %s41
      %p55 = scmp.eq.s32.totalorder %s19, 1
      %p56 = por %p54, %p55
      %p58 = scmp.ne.s32.totalorder %s41, %s57
      %p59 = scmp.eq.s32.totalorder %s19, 0
      %p60 = por %p58, %p59
      %s62 = sadd.s32 %s61, 1
      %p65 = scmp.eq.s32.totalorder %s13, 1
      %p66 = scmp.ne.s32.totalorder %s61, %s63
      %p67 = scmp.eq.s32.totalorder %s13, 0
      %p68 = por %p66, %p67
      %p69 = scmp.ne.s32.totalorder %s61, %s63
      %p70 = scmp.eq.s32.totalorder %s18, 1
      %p71 = por %p69, %p70
      %p72 = scmp.ne.s32.totalorder %s63, %s64
      %p73 = scmp.eq.s32.totalorder %s18, 0
      %p74 = por %p72, %p73
      %p75 = scmp.ne.s32.totalorder %s63, %s64
      %p76 = scmp.eq.s32.totalorder %s19, 1
      %p77 = por %p75, %p76
      %p79 = scmp.ne.s32.totalorder %s64, %s78
      %p80 = scmp.eq.s32.totalorder %s19, 0
      %p81 = por %p79, %p80
      %s83 = sadd.s32 %s82, 1
      %p86 = scmp.eq.s32.totalorder %s13, 1
      %p87 = scmp.ne.s32.totalorder %s82, %s84
      %p88 = scmp.eq.s32.totalorder %s13, 0
      %p89 = por %p87, %p88
      %p90 = scmp.ne.s32.totalorder %s82, %s84
      %p91 = scmp.eq.s32.totalorder %s18, 1
      %p92 = por %p90, %p91
      %p93 = scmp.ne.s32.totalorder %s84, %s85
      %p94 = scmp.eq.s32.totalorder %s18, 0
      %p95 = por %p93, %p94
      %p96 = scmp.ne.s32.totalorder %s84, %s85
      %p97 = scmp.eq.s32.totalorder %s19, 1
      %p98 = por %p96, %p97
      %p100 = scmp.ne.s32.totalorder %s85, %s99
      %p101 = scmp.eq.s32.totalorder %s19, 0
      %p102 = por %p100, %p101
      %s104 = sadd.s32 %s103, 1
      %p107 = scmp.eq.s32.totalorder %s13, 1
      %p108 = scmp.ne.s32.totalorder %s103, %s105
      %p109 = scmp.eq.s32.totalorder %s13, 0
      %p110 = por %p108, %p109
      %p111 = scmp.ne.s32.totalorder %s103, %s105
      %p112 = scmp.eq.s32.totalorder %s18, 1
      %p113 = por %p111, %p112
      %p114 = scmp.ne.s32.totalorder %s105, %s106
      %p115 = scmp.eq.s32.totalorder %s18, 0
      %p116 = por %p114, %p115
      %p117 = scmp.ne.s32.totalorder %s105, %s106
      %p118 = scmp.eq.s32.totalorder %s19, 1
      %p119 = por %p117, %p118
      %p121 = scmp.ne.s32.totalorder %s106, %s120
      %p122 = scmp.eq.s32.totalorder %s19, 0
      %p123 = por %p121, %p122
      %s124 = ssub.s32 %s20, %s32
      %s125 = ssub.s32 %s21, %s28
      %s126 = sor.u32 %s124, %s125
      %p127 = scmp.eq.s32.totalorder %s126, 0
      %s129 = sadd.s32 %s128, 1
      %s130 = scalar_select %p127, %s128, %s129
      %p133 = pneg %p127
      %p134 = scmp.eq.s32.totalorder %s13, 1
      %p135 = por %p133, %p134
      %p136 = scmp.ne.s32.totalorder %s128, %s131
      %p137 = scmp.eq.s32.totalorder %s13, 0
      %p138 = por %p136, %p137
      %p139 = scmp.ne.s32.totalorder %s128, %s131
      %p140 = scmp.eq.s32.totalorder %s18, 1
      %p141 = por %p139, %p140
      %p142 = scmp.ne.s32.totalorder %s131, %s132
      %p143 = scmp.eq.s32.totalorder %s18, 0
      %p144 = por %p142, %p143
      %p145 = scmp.ne.s32.totalorder %s131, %s132
      %p146 = scmp.eq.s32.totalorder %s19, 1
      %p147 = por %p145, %p146
      %p149 = scmp.ne.s32.totalorder %s132, %s148
      %p150 = scmp.eq.s32.totalorder %s19, 0
      %p151 = por %p149, %p150
      %p152 = scmp.le.s32.totalorder 1, %s13
      %p153 = scmp.lt.s32.totalorder %s13, 3
      %p154 = pnand %p152, %p153
      %p155 = pneg %p154
      // Predicated region
      $region9: #{tpu_custom_call.1} parent=5 // pred_check
        _
      $region10: #{tpu_custom_call.1} parent=5 // pred_check_branch
        %157 = sbr.rel (%p154) target = $region12
      $region11: #{tpu_custom_call.1} parent=5 // pred_region
        %s158 = ssub.s32 %s13, 1
        // Predicated region
        $region13: #{tpu_custom_call.1} parent=11 // pred_check
          %p159 = pneg %p74
        $region14: #{tpu_custom_call.1} parent=11 // pred_check_branch
          %161 = sbr.rel (%p159) target = $region16
        $region15: #{tpu_custom_call.1} parent=11 // pred_region
          _
        $region16: #{tpu_custom_call.1} parent=11 // pred_fallthru
          _
        // Predicated region
        $region17: #{tpu_custom_call.1} parent=11 // pred_check
          %p162 = pneg %p95
        $region18: #{tpu_custom_call.1} parent=11 // pred_check_branch
          %164 = sbr.rel (%p162) target = $region20
        $region19: #{tpu_custom_call.1} parent=11 // pred_region
          _
        $region20: #{tpu_custom_call.1} parent=11 // pred_fallthru
          _
        // Predicated region
        $region21: #{tpu_custom_call.1} parent=11 // pred_check
          %p165 = pneg %p116
        $region22: #{tpu_custom_call.1} parent=11 // pred_check_branch
          %167 = sbr.rel (%p165) target = $region24
        $region23: #{tpu_custom_call.1} parent=11 // pred_region
          _
        $region24: #{tpu_custom_call.1} parent=11 // pred_fallthru
          _
      $region12: #{tpu_custom_call.1} parent=5 // pred_fallthru
        _
      %p168 = scmp.lt.s32.totalorder %s13, 2
      // Predicated region
      $region25: #{tpu_custom_call.1} parent=5 // pred_check
        %p169 = pneg %p168
      $region26: #{tpu_custom_call.1} parent=5 // pred_check_branch
        %171 = sbr.rel (%p169) target = $region28
      $region27: #{tpu_custom_call.1} parent=5 // pred_region
        // Predicated region
        $region29: #{tpu_custom_call.1} parent=27 // pred_check
          %p172 = pneg %p47
        $region30: #{tpu_custom_call.1} parent=27 // pred_check_branch
          %174 = sbr.rel (%p172) target = $region32
        $region31: #{tpu_custom_call.1} parent=27 // pred_region
          %s175 = smul.u32 8, %s21
          %p176 = scmp.lt.s32.totalorder %s20, 1
          %s177 = scalar_select %p176, %s20, 1
          %p178 = scmp.lt.s32.totalorder %s175, 7
          %s179 = scalar_select %p178, %s175, 7
          %s180 = smul.addr %s177, 8
          %s181 = sadd.s32 %s179, %s180
          %s182 = smul.addr %s181, 4
          %s183 = scalar_lea.vmem %s0, %s182
          %s184 = smul.u32 8, %s21
        $region32: #{tpu_custom_call.1} parent=27 // pred_fallthru
          _
      $region28: #{tpu_custom_call.1} parent=5 // pred_fallthru
        _
      %p185 = scmp.le.s32.totalorder 1, %s13
      %p186 = scmp.lt.s32.totalorder %s13, 3
      %p187 = pnand %p185, %p186
      %p188 = pneg %p187
      // Predicated region
      $region33: #{tpu_custom_call.1} parent=5 // pred_check
        _
      $region34: #{tpu_custom_call.1} parent=5 // pred_check_branch
        %190 = sbr.rel (%p187) target = $region36
      $region35: #{tpu_custom_call.1} parent=5 // pred_region
        %s191 = ssub.s32 %s13, 1
        %s192 = smul.u32 8, %s23
        %p193 = scmp.lt.s32.totalorder %s22, 1
        %s194 = scalar_select %p193, %s22, 1
        %p195 = scmp.lt.s32.totalorder %s192, 7
        %s196 = scalar_select %p195, %s192, 7
        %s197 = smul.addr %s194, 8
        %s198 = sadd.s32 %s196, %s197
        %s199 = smul.addr %s198, 4
        %s200 = scalar_lea.vmem %s0, %s199
        %p201 = pneg %p53
        %p202 = pneg %p50
        %p203 = pneg %p74
        %p204 = pneg %p71
        %p205 = pneg %p95
        %p206 = pneg %p92
        %p207 = pneg %p116
        %p208 = pneg %p113
        %p209 = pneg %p144
        %p210 = pneg %p141
        %s211 = sand.u32 %s131, 1
        %s212 = scalar_lea.sflag [#allocation3], %s211
        %s213 = sand.u32 %s131, 1
        %s214 = smul.addr %s213, 64
        %s215 = scalar_lea.vmem [#allocation2], %s214
        %s216 = smul.u32 8, %s23
        %p217 = scmp.lt.s32.totalorder %s22, 1
        %s218 = scalar_select %p217, %s22, 1
        %p219 = scmp.lt.s32.totalorder %s216, 7
        %s220 = scalar_select %p219, %s216, 7
        %s221 = smul.addr %s218, 8
        %s222 = sadd.s32 %s220, %s221
        %s223 = smul.addr %s222, 4
        %s224 = scalar_lea.vmem %s0, %s223
        %s225 = smul.u32 8, %s23
        %s226 = smul.u32 8, %s23
        %v228 = vld [vmem:[%s224] sm:$0xf]
        %v229 = vld [vmem:[%s224 + $0x4] sm:$0xf]
        %v230 = vld [vmem:[%s224 + $0x8] sm:$0xf]
        %v231 = vld [vmem:[%s224 + $0xc] sm:$0xf]
        %v232 = vld [vmem:[%s224 + $0x10] sm:$0xf]
        %v233 = vld [vmem:[%s224 + $0x14] sm:$0xf]
        %v234 = vld [vmem:[%s224 + $0x18] sm:$0xf]
        %v235 = vld [vmem:[%s224 + $0x1c] sm:$0xf]
        %v236 = vld [vmem:[%s1] sm:$0xf]
        %v237 = vld [vmem:[%s1 + $0x4] sm:$0x3]
        %v238 = vld [vmem:[%s2] sm:$0x1]
        %v240 = vperm.slane %v238, 0
        %v250 = vunpack.c.l.b16 %v228
        %v251 = vunpack.c.l.b16 %v229
        %v252 = vunpack.c.l.b16 %v230
        %v253 = vunpack.c.l.b16 %v231
        %v254 = vunpack.c.l.b16 %v232
        %v255 = vunpack.c.l.b16 %v233
        %v256 = vunpack.c.l.b16 %v234
        %v257 = vunpack.c.l.b16 %v235
        %v258 = vpack.c.b16 %v251, %v250
        %v259 = vpack.c.b16 %v253, %v252
        %v260 = vpack.c.b16 %v255, %v254
        %v261 = vpack.c.b16 %v257, %v256
        %v264 = vunpack.c.l.b16 %v236
        %v265 = vunpack.c.l.b16 %v237
        %v266 = vpack.c.b16 %v265, %v264
        %vm267 = vcmask 97280
        %v269 = vsel %vm267, %v258, 0
        %v272 = vsel %vm267, %v259, 0
        %v275 = vsel %vm267, %v260, 0
        %v278 = vsel %vm267, %v261, 0
        %vm280 = vcmask 1045504
        %v282 = vsel %vm280, %v266, 0
        %284 = vmatpush.bf16.msra.mxu0 0
        %285 = vmatpush.bf16.msra.mxu0 0
        %286 = vmatpush.bf16.msra.mxu0 0
        %287 = vmatpush.bf16.msra.mxu0 0
        %288 = vmatpush.bf16.msra.mxu0 0
        %289 = vmatpush.bf16.msra.mxu0 0
        %290 = vmatpush.bf16.msra.mxu0 0
        %291 = vmatpush.bf16.msra.mxu0 %v282
        %292 = vmatmul.bf16.gmra.mxu0 %v269
        %v293 = vpop.f32.mrf.mxu0
        %v294 = vadd.f32 %v240, %v293
        %v295 = vpop.f32.mrf.mxu0
        %v296 = vadd.f32 %v240, %v295
        %297 = vmatmul.bf16.gmra.mxu0 %v272
        %v298 = vpop.f32.mrf.mxu0
        %v299 = vadd.f32 %v240, %v298
        %v300 = vpop.f32.mrf.mxu0
        %v301 = vadd.f32 %v240, %v300
        %302 = vmatmul.bf16.gmra.mxu0 %v275
        %v303 = vpop.f32.mrf.mxu0
        %v304 = vadd.f32 %v240, %v303
        %v305 = vpop.f32.mrf.mxu0
        %v306 = vadd.f32 %v240, %v305
        %307 = vmatmul.bf16.gmra.mxu0 %v278
        %v308 = vpop.f32.mrf.mxu0
        %v309 = vadd.f32 %v240, %v308
        %v310 = vpop.f32.mrf.mxu0
        %v311 = vadd.f32 %v240, %v310
        %312 = vdwg.mxu0
        %v313 = vmax.f32 %v294, 0.0
        %v314 = vmax.f32 %v296, 0.0
        %v315 = vmax.f32 %v299, 0.0
        %v316 = vmax.f32 %v301, 0.0
        %v317 = vmax.f32 %v304, 0.0
        %v318 = vmax.f32 %v306, 0.0
        %v319 = vmax.f32 %v309, 0.0
        %v320 = vmax.f32 %v311, 0.0
        %v321 = vld [vmem:[%s3] sm:$0x1]
        %v323 = vperm.slane %v321, 0
        %v325 = vadd.f32 %v313, %v323
        %v326 = vadd.f32 %v314, %v323
        %v327 = vadd.f32 %v315, %v323
        %v328 = vadd.f32 %v316, %v323
        %v329 = vadd.f32 %v317, %v323
        %v330 = vadd.f32 %v318, %v323
        %v331 = vadd.f32 %v319, %v323
        %v332 = vadd.f32 %v320, %v323
        %v333 = vpack.c.bf16 %v325, %v325
        %v334 = vpack.c.bf16 %v326, %v326
        %v335 = vpack.c.bf16 %v327, %v327
        %v336 = vpack.c.bf16 %v328, %v328
        %v337 = vpack.c.bf16 %v329, %v329
        %v338 = vpack.c.bf16 %v330, %v330
        %v339 = vpack.c.bf16 %v331, %v331
        %v340 = vpack.c.bf16 %v332, %v332
        %vm341 = vcmask 125952
        %342 = vst.msk [vmem:[%s215] sm:$0xf] %vm341, %v333
        %343 = vst.msk [vmem:[%s215 + $0x8] sm:$0xf] %vm341, %v334
        %344 = vst.msk [vmem:[%s215 + $0x10] sm:$0xf] %vm341, %v335
        %345 = vst.msk [vmem:[%s215 + $0x18] sm:$0xf] %vm341, %v336
        %346 = vst.msk [vmem:[%s215 + $0x20] sm:$0xf] %vm341, %v337
        %347 = vst.msk [vmem:[%s215 + $0x28] sm:$0xf] %vm341, %v338
        %348 = vst.msk [vmem:[%s215 + $0x30] sm:$0xf] %vm341, %v339
        %349 = vst.msk [vmem:[%s215 + $0x38] sm:$0xf] %vm341, %v340
        %358 = vrot.lane.b32.xlu0 %v333, 112
        %v359 = vpop.permute.xlu0 %358
        %360 = vrot.lane.b32.xlu0 %v334, 112
        %v361 = vpop.permute.xlu0 %360
        %362 = vrot.lane.b32.xlu0 %v335, 112
        %v363 = vpop.permute.xlu0 %362
        %364 = vrot.lane.b32.xlu0 %v336, 112
        %v365 = vpop.permute.xlu0 %364
        %366 = vrot.lane.b32.xlu0 %v337, 112
        %v367 = vpop.permute.xlu0 %366
        %368 = vrot.lane.b32.xlu0 %v338, 112
        %v369 = vpop.permute.xlu0 %368
        %370 = vrot.lane.b32.xlu0 %v339, 112
        %v371 = vpop.permute.xlu0 %370
        %372 = vrot.lane.b32.xlu0 %v340, 112
        %v373 = vpop.permute.xlu0 %372
        %s382 = scalar_lea.vmem %s215, 4 [#allocation2]
        %383 = vst.msk [vmem:[%s382] sm:$0xf] %vm341, %v359
        %384 = vst.msk [vmem:[%s382 + $0x8] sm:$0xf] %vm341, %v361
        %385 = vst.msk [vmem:[%s382 + $0x10] sm:$0xf] %vm341, %v363
        %386 = vst.msk [vmem:[%s382 + $0x18] sm:$0xf] %vm341, %v365
        %387 = vst.msk [vmem:[%s382 + $0x20] sm:$0xf] %vm341, %v367
        %388 = vst.msk [vmem:[%s382 + $0x28] sm:$0xf] %vm341, %v369
        %389 = vst.msk [vmem:[%s382 + $0x30] sm:$0xf] %vm341, %v371
        %390 = vst.msk [vmem:[%s382 + $0x38] sm:$0xf] %vm341, %v373
        %s391 = sand.u32 %s131, 1
        %s392 = scalar_lea.sflag [#allocation3], %s391
        %s393 = sand.u32 %s131, 1
        %s394 = smul.addr %s393, 64
        %s395 = scalar_lea.vmem [#allocation2], %s394
        // Predicated region
        $region37: #{tpu_custom_call.1} parent=35 // pred_check
          %p396 = pneg %p141
        $region38: #{tpu_custom_call.1} parent=35 // pred_check_branch
          %398 = sbr.rel (%p396) target = $region40
        $region39: #{tpu_custom_call.1} parent=35 // pred_region
          %s399 = smul.u32 8, %s23
          %401 = vsyncadd %s392, 0
          %s402 = smul.addr %s399, 2
          %s403 = smul.addr %s22, 16
          %s404 = sadd.s32 %s402, %s403
          %s405 = smul.addr %s404, 4
          %s406 = scalar_lea.hbm %s4, %s405
          %s407 = sshll.u32 %s395, 4
          %s408 = int_to_ptr.vmem [resolvable:$true] %s407
          %s409 = sshll.u32 %s406, 4
          %s410 = int_to_ptr.hbm [resolvable:$true] %s409
          %415 = dma.vmem_to_hbm [thread:$0]  %s408, 1024, %s410, %s392, 64, 64, 4
        $region40: #{tpu_custom_call.1} parent=35 // pred_fallthru
          _
      $region36: #{tpu_custom_call.1} parent=5 // pred_fallthru
        _
      %p416 = scmp.le.s32.totalorder 2, %s13
      // Predicated region
      $region41: #{tpu_custom_call.1} parent=5 // pred_check
        %p417 = pneg %p416
      $region42: #{tpu_custom_call.1} parent=5 // pred_check_branch
        %419 = sbr.rel (%p417) target = $region44
      $region43: #{tpu_custom_call.1} parent=5 // pred_region
        %s420 = ssub.s32 %s13, 2
        // Predicated region
        $region45: #{tpu_custom_call.1} parent=43 // pred_check
          %p421 = pneg %p147
        $region46: #{tpu_custom_call.1} parent=43 // pred_check_branch
          %423 = sbr.rel (%p421) target = $region48
        $region47: #{tpu_custom_call.1} parent=43 // pred_region
          %s424 = sand.u32 %s132, 1
          %s425 = scalar_lea.sflag [#allocation3], %s424
          %s426 = sand.u32 %s132, 1
          %s427 = smul.addr %s426, 64
          %s428 = scalar_lea.vmem [#allocation2], %s427
          %430 = dma.done %s425, 1024
        $region48: #{tpu_custom_call.1} parent=43 // pred_fallthru
          _
      $region44: #{tpu_custom_call.1} parent=5 // pred_fallthru
        _
    $region6: #{tpu_custom_call.1} parent=1 // loop_footer
      %s17 = sadd.s32 1, %s13
    $region7: #{tpu_custom_call.1} parent=1 // loop_footer_branch
      %12 = sbr.rel target = $region3
    $region8: #{tpu_custom_call.1} parent=1 // loop_exit
      _
    %431 = vsyncpa [#allocation3], 1
    %s432 = scalar_lea.sflag [#allocation3], 1
    %433 = vsyncpa %s432, 1

</llo_original>
